<compile_context>
chip_gen: v6e
topology: v6e:2x2x1
jax: 0.10.0
libtpu: 0.0.40
codegen_flags: <defaults>
</compile_context>

<pallas_src>
import functools

import jax
import jax.numpy as jnp
from jax.experimental import pallas as pl
from jax.experimental.pallas import tpu as pltpu

_FALLBACK_VMEM_CAPACITY = 64 * 1024 * 1024   # conservative: v7x per-TC VMEM
_MAX_VMEM_LIMIT = 64 * 1024 * 1024           # this kernel never needs more
_VMEM_HEADROOM = 4 * 1024 * 1024             # compiler-internal scratch slack
_MIN_GRID_STEPS = 4                          # pipelining + v7x megacore sharding
_MIN_BLOCK_BYTES = 2 * 1024 * 1024           # per input block (amortize step cost)
_MAX_TILE_ROWS = 2048                        # bound per-step latency


def _rmsnorm_kernel(x_ref, w_ref, o_ref, *, eps: float, inv_hidden: float):
    # x_ref: (tile_rows, hidden), w_ref: (1, hidden), o_ref: (tile_rows, hidden)
    x = x_ref[...].astype(jnp.float32)
    ssq = jnp.sum(x * x, axis=-1, keepdims=True)
    inv = jax.lax.rsqrt(ssq * inv_hidden + eps)       # EUP rsqrt
    normed = (x * inv).astype(x_ref.dtype)            # cast back to input dtype
    # weight * normed — dtype promotion matches PyTorch (weight.dtype vs x.dtype)
    o_ref[...] = (w_ref[...] * normed).astype(o_ref.dtype)


def _cdiv(a: int, b: int) -> int:
    return -(-a // b)


def _round_up(a: int, b: int) -> int:
    return _cdiv(a, b) * b


def _sublane_align(dtype) -> int:
    # Full-sublane packing: 8 rows for 4-byte, 16 for 2-byte, 32 for 1-byte.
    itemsize = jnp.dtype(dtype).itemsize
    return max(8, 32 // max(itemsize, 1))


def _derive_vmem_budgets() -> tuple[int, int]:
    """Returns (vmem_limit_bytes, block_budget_bytes), generation-aware."""
    try:
        cap = int(pltpu.get_tpu_info().vmem_capacity_bytes)
    except Exception:
        cap = _FALLBACK_VMEM_CAPACITY
    # Use ~3/4 of physical VMEM (<= 48 MiB of v7x's 64 MiB, 64 MiB cap on the
    # 128 MiB parts), leaving headroom for compiler scratch.
    vmem_limit = min(cap * 3 // 4, _MAX_VMEM_LIMIT)
    block_budget = max(vmem_limit - _VMEM_HEADROOM, vmem_limit // 2)
    return vmem_limit, block_budget


def _choose_tile_rows(rows: int, hidden: int, in_dtype, out_dtype,
                      block_budget: int) -> int:
    align = max(_sublane_align(in_dtype), _sublane_align(out_dtype))
    in_isize = jnp.dtype(in_dtype).itemsize
    out_isize = jnp.dtype(out_dtype).itemsize

    # Per-row VMEM footprint: double-buffered input block + double-buffered
    # output block + ~2 f32 intermediates (x_f32 and x*x / normed) that the
    # kernel body materializes regardless of the input dtype.
    bytes_per_row = hidden * (2 * in_isize + 2 * out_isize + 2 * 4)
    max_rows = max(align, (block_budget // bytes_per_row) // align * align)

    # Never allocate more rows than needed (rounded up to the alignment).
    needed = _round_up(rows, align)

    # Target at least _MIN_GRID_STEPS grid steps when rows permit so the
    # BlockSpec pipeline can prefetch i+1 / write back i-1 under compute of i
    # (and v7x's two TCs both get work), but never shrink an input block below
    # _MIN_BLOCK_BYTES.
    target = _round_up(_cdiv(rows, _MIN_GRID_STEPS), align)
    floor_rows = _round_up(_cdiv(_MIN_BLOCK_BYTES, max(hidden * in_isize, 1)), align)
    target = max(target, floor_rows, align)

    return max(align, min(max_rows, needed, target, _MAX_TILE_ROWS))


def rmsnorm_pallas(x: jax.Array, weight: jax.Array, eps: float = 1e-6,
                   tile_rows: int | None = None) -> jax.Array:
    """RMSNorm over the last axis of x, scaled by weight (shape: [hidden])."""
    orig_shape = x.shape
    hidden = orig_shape[-1]
    rows = 1
    for d in orig_shape[:-1]:
        rows *= d

    x2d = x.reshape(rows, hidden)
    w2d = weight.reshape(1, hidden)

    # Output dtype follows PyTorch promotion of weight.dtype * input_dtype.
    out_dtype = jnp.promote_types(weight.dtype, x.dtype)

    vmem_limit, block_budget = _derive_vmem_budgets()

    if tile_rows is None:
        tile_rows = _choose_tile_rows(rows, hidden, x.dtype, out_dtype,
                                      block_budget)
    else:
        # Respect caller override but keep it sublane-aligned.
        align = max(_sublane_align(x.dtype), _sublane_align(out_dtype))
        tile_rows = max(align, (tile_rows // align) * align)

    # cdiv grid: tail block (if any) is padded by Pallas; rows are independent
    # so padded-row garbage never affects valid rows, and its writes are dropped.
    grid = (pl.cdiv(rows, tile_rows),)

    out2d = pl.pallas_call(
        functools.partial(_rmsnorm_kernel, eps=eps, inv_hidden=1.0 / hidden),
        out_shape=jax.ShapeDtypeStruct((rows, hidden), out_dtype),
        grid=grid,
        in_specs=[
            pl.BlockSpec((tile_rows, hidden), lambda i: (i, 0)),
            pl.BlockSpec((1, hidden), lambda i: (0, 0)),   # weight stays resident
        ],
        out_specs=pl.BlockSpec((tile_rows, hidden), lambda i: (i, 0)),
        compiler_params=pltpu.CompilerParams(
            dimension_semantics=("parallel",),
            vmem_limit_bytes=vmem_limit,
        ),
    )(x2d, w2d)

    return out2d.reshape(orig_shape)


def rmsnorm_ref(x: jax.Array, weight: jax.Array, eps: float = 1e-6) -> jax.Array:
    """Pure-JAX reference mirroring the PyTorch module."""
    x_f32 = x.astype(jnp.float32)
    var = jnp.mean(x_f32 * x_f32, axis=-1, keepdims=True)
    normed = (x_f32 * jax.lax.rsqrt(var + eps)).astype(x.dtype)
    return weight * normed


if __name__ == "__main__":
    # Smoke test only (hidden=32 is lane-sparse / single-step by design).
    # Benchmark with Qwen3-class shapes instead: hidden in {2048..5120}
    # (multiples of 128) and rows >= several thousand.
    batch, seq, hidden = 2, 8, 32
    eps = 1e-6

    key = jax.random.PRNGKey(0)
    x = jax.random.normal(key, (batch, seq, hidden), dtype=jnp.float32)
    # Deterministic parameter init: torch.ones(hidden_size)
    weight = jnp.ones((hidden,), dtype=jnp.float32)

    out = rmsnorm_pallas(x, weight, eps=eps)
    out = jax.block_until_ready(out)

    ref = rmsnorm_ref(x, weight, eps=eps)
    assert out.shape == x.shape
    assert out.dtype == jnp.promote_types(weight.dtype, x.dtype)
    assert jnp.allclose(out, ref, atol=1e-5, rtol=1e-5), "mismatch vs reference"

    print("KERNEL_OK")
</pallas_src>

<mosaic_0001>
module attributes {stable_mosaic.version = 11 : i64} {
  func.func @_rmsnorm_kernel(%arg0: i32, %arg1: memref<16x32xf32, #tpu.memory_space<vmem>>, %arg2: memref<1x32xf32, #tpu.memory_space<vmem>>, %arg3: memref<16x32xf32, #tpu.memory_space<vmem>>) attributes {dimension_semantics = [#tpu.dimension_semantics<parallel>], iteration_bounds = array<i64: 1>, scalar_prefetch = 0 : i64, scratch_operands = 0 : i64, tpu.core_type = #tpu.core_type<tc>, window_params = [{transform_indices = @transform_0, window_bounds = array<i64: 16, 32>}, {pipeline_mode = #tpu.pipeline_mode<synchronous>, transform_indices = @transform_1, window_bounds = array<i64: 1, 32>}, {transform_indices = @transform_2, window_bounds = array<i64: 16, 32>}]} {
    %c0 = arith.constant 0 : index
    %c0_0 = arith.constant 0 : index
    %0 = vector.load %arg1[%c0, %c0_0] : memref<16x32xf32, #tpu.memory_space<vmem>>, vector<16x32xf32>
    %1 = arith.mulf %0, %0 : vector<16x32xf32>
    %cst = arith.constant dense<0.000000e+00> : vector<16xf32>
    %2 = vector.multi_reduction <add>, %1, %cst [1] : vector<16x32xf32> to vector<16xf32>
    %3 = vector.shape_cast %2 : vector<16xf32> to vector<16x1xf32>
    %cst_1 = arith.constant 3.125000e-02 : f32
    %4 = vector.broadcast %cst_1 : f32 to vector<16x1xf32>
    %5 = arith.mulf %3, %4 : vector<16x1xf32>
    %cst_2 = arith.constant 9.99999997E-7 : f32
    %6 = vector.broadcast %cst_2 : f32 to vector<16x1xf32>
    %7 = arith.addf %5, %6 : vector<16x1xf32>
    %8 = math.rsqrt %7 : vector<16x1xf32>
    %9 = vector.broadcast %8 : vector<16x1xf32> to vector<16x32xf32>
    %10 = arith.mulf %0, %9 : vector<16x32xf32>
    %c0_3 = arith.constant 0 : index
    %c0_4 = arith.constant 0 : index
    %11 = vector.load %arg2[%c0_3, %c0_4] : memref<1x32xf32, #tpu.memory_space<vmem>>, vector<1x32xf32>
    %12 = vector.broadcast %11 : vector<1x32xf32> to vector<16x32xf32>
    %13 = arith.mulf %12, %10 : vector<16x32xf32>
    %c0_5 = arith.constant 0 : index
    %c0_6 = arith.constant 0 : index
    %14 = vector.load %arg3[%c0_5, %c0_6] : memref<16x32xf32, #tpu.memory_space<vmem>>, vector<16x32xf32>
    tpu.vector_store %arg3[%c0_5, %c0_6], %13 {strides = array<i32>} : memref<16x32xf32, #tpu.memory_space<vmem>>, vector<16x32xf32>,
    return
  }
  func.func @transform_0(%arg0: i32) -> (i32, i32) {
    %c0_i32 = arith.constant 0 : i32
    %c0_i32_0 = arith.constant 0 : i32
    return %arg0, %c0_i32 : i32, i32
  }
  func.func @transform_1(%arg0: i32) -> (i32, i32) {
    %c0_i32 = arith.constant 0 : i32
    %c0_i32_0 = arith.constant 0 : i32
    %c0_i32_1 = arith.constant 0 : i32
    return %c0_i32, %c0_i32_0 : i32, i32
  }
  func.func @transform_2(%arg0: i32) -> (i32, i32) {
    %c0_i32 = arith.constant 0 : i32
    %c0_i32_0 = arith.constant 0 : i32
    return %arg0, %c0_i32 : i32, i32
  }
}

</mosaic_0001>

<llo_original>
// kernel: tpu_custom_call.1
$region0: #{tpu_custom_call.1}
  #allocation0 [shape = 'u32[]', space=smem, size = 0x4, offset = 0x4, fixed_abs, tag = 'smem constant byte address 0x4 - core index']
  #allocation1 [shape = 'u32[144,128]{1,0:T(1,128)}', space=vmem, size = 0x12000, scoped, tag = 'internal scratch']
  %s0 = inlined_call_operand.hbm [shape: f32[16,32], index: 0, kind: input, shape index: {}]
  %s1 = inlined_call_operand.vmem [shape: f32[1,32], index: 1, kind: input, shape index: {}]
  %s2 = inlined_call_operand.hbm [shape: f32[16,32], index: 2, kind: output, shape index: {}]
  %s3 = sld [smem:[#allocation0]]
  $region22: #{tpu_custom_call.1} parent=0
    _
  %s5 = ssub.s32 1, %s3
  %s6 = scalar_select 0, %s5, %s3
  $region1: #{tpu_custom_call.1} parent=0
    #allocation2 [shape = 'u8[8192]{0}', space=vmem, size = 0x2000, scoped, tag = 'input window, operand 0, single buffered']
    #allocation3 [shape = 's32[1]{0}', space=sflag, size = 0x4, scoped, tag = 'scoped memory for tpu_custom_call.1']
    #allocation4 [shape = 's32[1]{0}', space=sflag, size = 0x4, scoped, tag = 'scoped memory for tpu_custom_call.1']
    #allocation5 [shape = 'u8[8192]{0}', space=vmem, size = 0x2000, scoped, tag = 'output window, operand 0, single buffered']
    %7 = vsyncpa [#allocation3], 0
    %8 = vsyncpa [#allocation4], 0
    // Predicated region
    $region2: #{tpu_custom_call.1} parent=1 // pred_check
      _
    $region3: #{tpu_custom_call.1} parent=1 // pred_check_branch
      %10 = sbr.rel (0) target = $region5
    $region4: #{tpu_custom_call.1} parent=1 // pred_region
      %s12 = ssub.s32 256, 256
      %13 = vsyncadd [#allocation3], %s12
      %s14 = sshll.u32 [#allocation2], 4
      %s15 = int_to_ptr.vmem [resolvable:$true] %s14
      %20 = dma.hbm_to_vmem [thread:$0]  %s0, 256, %s15, [#allocation3], 128, 128, 8
    $region5: #{tpu_custom_call.1} parent=1 // pred_fallthru
      _
    // Predicated region
    $region6: #{tpu_custom_call.1} parent=1 // pred_check
      _
    $region7: #{tpu_custom_call.1} parent=1 // pred_check_branch
      %22 = sbr.rel (0) target = $region9
    $region8: #{tpu_custom_call.1} parent=1 // pred_region
      _
    $region9: #{tpu_custom_call.1} parent=1 // pred_fallthru
      _
    // Predicated region
    $region10: #{tpu_custom_call.1} parent=1 // pred_check
      _
    $region11: #{tpu_custom_call.1} parent=1 // pred_check_branch
      %24 = sbr.rel (0) target = $region13
    $region12: #{tpu_custom_call.1} parent=1 // pred_region
      %25 = dma.done [#allocation3], 256
    $region13: #{tpu_custom_call.1} parent=1 // pred_fallthru
      _
    %v26 = vld [vmem:[#allocation2] sm:$0xff]
    %v27 = vld [vmem:[#allocation2 + $0x8] sm:$0xff]
    %v28 = vmul.f32 %v26, %v26
    %v29 = vmul.f32 %v27, %v27
    %vm30 = vcmask 261120
    %v31 = vsel %vm30, %v28, 0.0
    %32 = vadd.xlane.f32.xlu0 %v31
    %v33 = vpop.xlane.xlu0 %32
    %v34 = vsel %vm30, %v29, 0.0
    %35 = vadd.xlane.f32.xlu0 %v34
    %v36 = vpop.xlane.xlu0 %35
    %v37 = vmul.f32 %v33, 0.03125
    %v38 = vmul.f32 %v36, 0.03125
    %v39 = vadd.f32 %v37, 1e-06
    %v40 = vadd.f32 %v38, 1e-06
    %v41 = vrsqrt.pop %v39
    %v42 = vrsqrt.pop %v40
    %v43 = vmul.f32 %v26, %v41
    %v44 = vmul.f32 %v27, %v42
    %v45 = vld [vmem:[%s1] sm:$0x1]
    %v47 = vlaneseq
    %v48 = vshrl.u32 %v47, 7
    %v49 = vsub.s32 0, %v48
    %v50 = vrot.slane %v45, %v49
    %v52 = vmul.f32 %v50, %v43
    %v53 = vmul.f32 %v50, %v44
    %54 = vst.msk [vmem:[#allocation5] sm:$0xff] %vm30, %v52
    %55 = vst.msk [vmem:[#allocation5 + $0x8] sm:$0xff] %vm30, %v53
    // Predicated region
    $region14: #{tpu_custom_call.1} parent=1 // pred_check
      _
    $region15: #{tpu_custom_call.1} parent=1 // pred_check_branch
      %57 = sbr.rel (0) target = $region17
    $region16: #{tpu_custom_call.1} parent=1 // pred_region
      %s59 = ssub.s32 256, 256
      %60 = vsyncadd [#allocation4], %s59
      %s61 = sshll.u32 [#allocation5], 4
      %s62 = int_to_ptr.vmem [resolvable:$true] %s61
      %67 = dma.vmem_to_hbm [thread:$0]  %s62, 256, %s2, [#allocation4], 128, 128, 8
    $region17: #{tpu_custom_call.1} parent=1 // pred_fallthru
      _
    // Predicated region
    $region18: #{tpu_custom_call.1} parent=1 // pred_check
      _
    $region19: #{tpu_custom_call.1} parent=1 // pred_check_branch
      %69 = sbr.rel (0) target = $region21
    $region20: #{tpu_custom_call.1} parent=1 // pred_region
      %70 = dma.done [#allocation4], 256
    $region21: #{tpu_custom_call.1} parent=1 // pred_fallthru
      _
    %71 = vsyncpa [#allocation3], 1
    %72 = vsyncpa [#allocation4], 1

</llo_original>
